<compile_context>
chip_gen: v5e
topology: v5e:2x2
jax: 0.10.0
libtpu: 0.0.40
codegen_flags: <defaults>
</compile_context>

<pallas_src>
import functools

import jax
import jax.numpy as jnp
from jax.experimental import pallas as pl
from jax.experimental.pallas import tpu as pltpu


def _residual_kernel(fn, n_params, x_ref, *rest):
    """Computes o = fn(x_tile, *param_tiles) + x_tile on one (rows, D) tile."""
    param_refs = rest[:n_params]
    o_ref = rest[n_params]

    x_tile = x_ref[...].astype(jnp.float32)
    fx = fn(x_tile, *[p[...] for p in param_refs])
    o_ref[...] = (fx.astype(jnp.float32) + x_tile).astype(o_ref.dtype)


def residual_apply(fn, x, *params, block_rows=512):
    """Fused Pallas implementation of Residual.forward: fn(x, *params) + x.

    x is interpreted as (..., D); leading dims are flattened to rows (a free
    reshape, no HBM copy). Rows go on the sublane axis in `block_rows` tiles,
    the full feature dim D sits on the lane axis (lane-dense blocks).
    """
    orig_shape = x.shape
    D = orig_shape[-1]
    x2 = x.reshape(-1, D)              # free reshape, no transpose / HBM copy
    R = x2.shape[0]

    # Row tile: either the full row extent or a multiple of 8 (sublane).
    br = min(block_rows, R)
    if br < R:
        br = max(8, (br // 8) * 8)
    grid_r = pl.cdiv(R, br)
    Rp = grid_r * br
    if Rp != R:
        # Zero-pad rows only when needed; padded rows are sliced off below.
        x2 = jnp.pad(x2, ((0, Rp - R), (0, 0)))

    kernel = functools.partial(_residual_kernel, fn, len(params))

    in_specs = [pl.BlockSpec((br, D), lambda i: (i, 0))]
    for p in params:
        # Resident parameter block: full extent, constant index_map -> one DMA.
        in_specs.append(
            pl.BlockSpec(p.shape, lambda i, _nd=p.ndim: (0,) * _nd))

    out = pl.pallas_call(
        kernel,
        out_shape=jax.ShapeDtypeStruct((Rp, D), x.dtype),
        grid_spec=pltpu.PrefetchScalarGridSpec(
            num_scalar_prefetch=0,
            grid=(grid_r,),
            in_specs=in_specs,
            out_specs=pl.BlockSpec((br, D), lambda i: (i, 0)),
        ),
        compiler_params=pltpu.CompilerParams(
            # Independent row tiles: megacore (v7x) can split the grid.
            dimension_semantics=("parallel",),
        ),
    )(x2, *params)

    if Rp != R:
        out = out[:R]
    return out.reshape(orig_shape)


class Residual:
    """Pallas counterpart of the PyTorch module:

        class Residual(nn.Module):
            def forward(self, x, **kwargs): return self.fn(x, **kwargs) + x

    `fn` is a JAX-traceable, tile-local function fn(x, *params, **kwargs);
    array parameters go in `params`, scalar kwargs are forwarded at call time.
    """

    def __init__(self, fn, params=(), block_rows=512):
        self.fn = fn
        self.params = tuple(params)
        self.block_rows = block_rows

    def __call__(self, x, **kwargs):
        fn = functools.partial(self.fn, **kwargs) if kwargs else self.fn
        return residual_apply(fn, x, *self.params, block_rows=self.block_rows)


def feed_forward(x, w1, b1, w2, b2):
    """Position-wise MLP (typical `fn` wrapped by Residual in the GCN model)."""
    h = jnp.dot(x, w1.astype(jnp.float32),
                preferred_element_type=jnp.float32) + b1.astype(jnp.float32)
    h = jax.nn.gelu(h)
    y = jnp.dot(h, w2.astype(jnp.float32),
                preferred_element_type=jnp.float32) + b2.astype(jnp.float32)
    return y


if __name__ == "__main__":
    # Small shapes consistent with the module's use in a GCN-transformer block:
    # batch=2, seq=16, hidden=128 (lane-dense), MLP hidden=256.
    N, T, D, H = 2, 16, 128, 256
    key = jax.random.PRNGKey(0)
    kx, k1, k2, k3, k4 = jax.random.split(key, 5)
    x = jax.random.normal(kx, (N, T, D), dtype=jnp.float32)
    w1 = jax.random.normal(k1, (D, H), dtype=jnp.float32) * 0.05
    b1 = jax.random.normal(k2, (1, H), dtype=jnp.float32) * 0.05
    w2 = jax.random.normal(k3, (H, D), dtype=jnp.float32) * 0.05
    b2 = jax.random.normal(k4, (1, D), dtype=jnp.float32) * 0.05

    block = Residual(feed_forward, params=(w1, b1, w2, b2))
    out = block(x)
    jax.block_until_ready(out)

    # Pure-JAX reference of Residual.forward: fn(x) + x
    ref = feed_forward(x, w1, b1, w2, b2) + x
    assert out.shape == x.shape, (out.shape, x.shape)
    max_err = float(jnp.max(jnp.abs(out - ref)))
    assert jnp.allclose(out, ref, rtol=1e-2, atol=1e-2), max_err
    print("KERNEL_OK")
</pallas_src>

<mosaic_0001>
module attributes {stable_mosaic.version = 11 : i64} {
  func.func @_residual_kernel(%arg0: i32, %arg1: memref<32x128xf32, #tpu.memory_space<vmem>>, %arg2: memref<128x256xf32, #tpu.memory_space<vmem>>, %arg3: memref<1x256xf32, #tpu.memory_space<vmem>>, %arg4: memref<256x128xf32, #tpu.memory_space<vmem>>, %arg5: memref<1x128xf32, #tpu.memory_space<vmem>>, %arg6: memref<32x128xf32, #tpu.memory_space<vmem>>) attributes {dimension_semantics = [#tpu.dimension_semantics<parallel>], iteration_bounds = array<i64: 1>, scalar_prefetch = 0 : i64, scratch_operands = 0 : i64, tpu.core_type = #tpu.core_type<tc>, window_params = [{transform_indices = @transform_0, window_bounds = array<i64: 32, 128>}, {pipeline_mode = #tpu.pipeline_mode<synchronous>, transform_indices = @transform_1, window_bounds = array<i64: 128, 256>}, {pipeline_mode = #tpu.pipeline_mode<synchronous>, transform_indices = @transform_2, window_bounds = array<i64: 1, 256>}, {pipeline_mode = #tpu.pipeline_mode<synchronous>, transform_indices = @transform_3, window_bounds = array<i64: 256, 128>}, {pipeline_mode = #tpu.pipeline_mode<synchronous>, transform_indices = @transform_4, window_bounds = array<i64: 1, 128>}, {transform_indices = @transform_5, window_bounds = array<i64: 32, 128>}]} {
    %c0 = arith.constant 0 : index
    %c0_0 = arith.constant 0 : index
    %0 = vector.load %arg1[%c0, %c0_0] : memref<32x128xf32, #tpu.memory_space<vmem>>, vector<32x128xf32>
    %c0_1 = arith.constant 0 : index
    %c0_2 = arith.constant 0 : index
    %1 = vector.load %arg2[%c0_1, %c0_2] : memref<128x256xf32, #tpu.memory_space<vmem>>, vector<128x256xf32>
    %c0_3 = arith.constant 0 : index
    %c0_4 = arith.constant 0 : index
    %2 = vector.load %arg3[%c0_3, %c0_4] : memref<1x256xf32, #tpu.memory_space<vmem>>, vector<1x256xf32>
    %c0_5 = arith.constant 0 : index
    %c0_6 = arith.constant 0 : index
    %3 = vector.load %arg4[%c0_5, %c0_6] : memref<256x128xf32, #tpu.memory_space<vmem>>, vector<256x128xf32>
    %c0_7 = arith.constant 0 : index
    %c0_8 = arith.constant 0 : index
    %4 = vector.load %arg5[%c0_7, %c0_8] : memref<1x128xf32, #tpu.memory_space<vmem>>, vector<1x128xf32>
    %cst = arith.constant dense<0.000000e+00> : vector<32x256xf32>
    %5 = tpu.matmul %0, %1, %cst {dimension_numbers = #tpu.dot_dimension_numbers<[1], [0], [0], [1], [0, 0, 1, 1], [], []>} : vector<32x128xf32>, vector<128x256xf32>, vector<32x256xf32> -> vector<32x256xf32>
    %6 = vector.broadcast %2 : vector<1x256xf32> to vector<32x256xf32>
    %7 = arith.addf %5, %6 : vector<32x256xf32>
    %8 = arith.mulf %7, %7 : vector<32x256xf32>
    %9 = arith.mulf %7, %8 : vector<32x256xf32>
    %cst_9 = arith.constant 4.471500e-02 : f32
    %10 = vector.broadcast %cst_9 : f32 to vector<32x256xf32>
    %11 = arith.mulf %10, %9 : vector<32x256xf32>
    %12 = arith.addf %7, %11 : vector<32x256xf32>
    %cst_10 = arith.constant 0.797884583 : f32
    %13 = vector.broadcast %cst_10 : f32 to vector<32x256xf32>
    %14 = arith.mulf %13, %12 : vector<32x256xf32>
    %15 = math.tanh %14 : vector<32x256xf32>
    %cst_11 = arith.constant 1.000000e+00 : f32
    %16 = vector.broadcast %cst_11 : f32 to vector<32x256xf32>
    %17 = arith.addf %16, %15 : vector<32x256xf32>
    %cst_12 = arith.constant 5.000000e-01 : f32
    %18 = vector.broadcast %cst_12 : f32 to vector<32x256xf32>
    %19 = arith.mulf %18, %17 : vector<32x256xf32>
    %20 = arith.mulf %7, %19 : vector<32x256xf32>
    %cst_13 = arith.constant dense<0.000000e+00> : vector<32x128xf32>
    %21 = tpu.matmul %20, %3, %cst_13 {dimension_numbers = #tpu.dot_dimension_numbers<[1], [0], [0], [1], [0, 0, 1, 1], [], []>} : vector<32x256xf32>, vector<256x128xf32>, vector<32x128xf32> -> vector<32x128xf32>
    %22 = vector.broadcast %4 : vector<1x128xf32> to vector<32x128xf32>
    %23 = arith.addf %21, %22 : vector<32x128xf32>
    %24 = arith.addf %23, %0 : vector<32x128xf32>
    %c0_14 = arith.constant 0 : index
    %c0_15 = arith.constant 0 : index
    %25 = vector.load %arg6[%c0_14, %c0_15] : memref<32x128xf32, #tpu.memory_space<vmem>>, vector<32x128xf32>
    tpu.vector_store %arg6[%c0_14, %c0_15], %24 {strides = array<i32>} : memref<32x128xf32, #tpu.memory_space<vmem>>, vector<32x128xf32>,
    return
  }
  func.func @transform_0(%arg0: i32) -> (i32, i32) {
    %c0_i32 = arith.constant 0 : i32
    %c0_i32_0 = arith.constant 0 : i32
    return %arg0, %c0_i32 : i32, i32
  }
  func.func @transform_1(%arg0: i32) -> (i32, i32) {
    %c0_i32 = arith.constant 0 : i32
    %c0_i32_0 = arith.constant 0 : i32
    %c0_i32_1 = arith.constant 0 : i32
    return %c0_i32, %c0_i32_0 : i32, i32
  }
  func.func @transform_2(%arg0: i32) -> (i32, i32) {
    %c0_i32 = arith.constant 0 : i32
    %c0_i32_0 = arith.constant 0 : i32
    %c0_i32_1 = arith.constant 0 : i32
    return %c0_i32, %c0_i32_0 : i32, i32
  }
  func.func @transform_3(%arg0: i32) -> (i32, i32) {
    %c0_i32 = arith.constant 0 : i32
    %c0_i32_0 = arith.constant 0 : i32
    %c0_i32_1 = arith.constant 0 : i32
    return %c0_i32, %c0_i32_0 : i32, i32
  }
  func.func @transform_4(%arg0: i32) -> (i32, i32) {
    %c0_i32 = arith.constant 0 : i32
    %c0_i32_0 = arith.constant 0 : i32
    %c0_i32_1 = arith.constant 0 : i32
    return %c0_i32, %c0_i32_0 : i32, i32
  }
  func.func @transform_5(%arg0: i32) -> (i32, i32) {
    %c0_i32 = arith.constant 0 : i32
    %c0_i32_0 = arith.constant 0 : i32
    return %arg0, %c0_i32 : i32, i32
  }
}

</mosaic_0001>

<llo_original>
// kernel: tpu_custom_call.1
$region0: #{tpu_custom_call.1}
  #allocation0 [shape = 'u32[]', space=smem, size = 0x4, offset = 0x4, fixed_abs, tag = 'smem constant byte address 0x4 - core index']
  #allocation1 [shape = 'u32[72,128]{1,0:T(1,128)}', space=vmem, size = 0x9000, scoped, tag = 'internal scratch']
  %s0 = inlined_call_operand.hbm [shape: f32[32,128], index: 0, kind: input, shape index: {}]
  %s1 = inlined_call_operand.hbm [shape: f32[128,256], index: 1, kind: input, shape index: {}]
  %s2 = inlined_call_operand.hbm [shape: f32[1,256], index: 2, kind: input, shape index: {}]
  %s3 = inlined_call_operand.hbm [shape: f32[256,128], index: 3, kind: input, shape index: {}]
  %s4 = inlined_call_operand.vmem [shape: f32[1,128], index: 4, kind: input, shape index: {}]
  %s5 = inlined_call_operand.hbm [shape: f32[32,128], index: 5, kind: output, shape index: {}]
  %s6 = sld [smem:[#allocation0]]
  $region46: #{tpu_custom_call.1} parent=0
    _
  %s8 = ssub.s32 1, %s6
  %s9 = scalar_select 0, %s8, %s6
  $region1: #{tpu_custom_call.1} parent=0
    #allocation2 [shape = 'u8[16384]{0}', space=vmem, size = 0x4000, scoped, tag = 'input window, operand 0, single buffered']
    #allocation3 [shape = 's32[1]{0}', space=sflag, size = 0x4, scoped, tag = 'scoped memory for tpu_custom_call.1']
    #allocation4 [shape = 's32[1]{0}', space=sflag, size = 0x4, scoped, tag = 'scoped memory for tpu_custom_call.1']
    #allocation5 [shape = 'u8[131072]{0}', space=vmem, size = 0x20000, scoped, tag = 'input window, operand 1, single buffered']
    #allocation6 [shape = 's32[1]{0}', space=sflag, size = 0x4, scoped, tag = 'scoped memory for tpu_custom_call.1']
    #allocation7 [shape = 'u8[1024]{0}', space=vmem, size = 0x400, scoped, tag = 'input window, operand 2, single buffered']
    #allocation8 [shape = 'u8[131072]{0}', space=vmem, size = 0x20000, scoped, tag = 'input window, operand 3, single buffered']
    #allocation9 [shape = 's32[1]{0}', space=sflag, size = 0x4, scoped, tag = 'scoped memory for tpu_custom_call.1']
    #allocation10 [shape = 'u8[16384]{0}', space=vmem, size = 0x4000, scoped, tag = 'output window, operand 0, single buffered']
    %10 = vsyncpa [#allocation3], 0
    %11 = vsyncpa [#allocation6], 0
    %12 = vsyncpa [#allocation9], 0
    %13 = vsyncpa [#allocation4], 0
    // Predicated region
    $region2: #{tpu_custom_call.1} parent=1 // pred_check
      _
    $region3: #{tpu_custom_call.1} parent=1 // pred_check_branch
      %15 = sbr.rel (0) target = $region5
    $region4: #{tpu_custom_call.1} parent=1 // pred_region
      %17 = vsyncadd [#allocation3], 0
      %s18 = sshll.u32 %s0, 4
      %s19 = int_to_ptr.hbm [resolvable:$true] %s18
      %s20 = sshll.u32 [#allocation2], 4
      %s21 = int_to_ptr.vmem [resolvable:$true] %s20
      %26 = dma.hbm_to_vmem [thread:$0]  %s19, 512, %s21, [#allocation3], 128, 128, 8
    $region5: #{tpu_custom_call.1} parent=1 // pred_fallthru
      _
    // Predicated region
    $region6: #{tpu_custom_call.1} parent=1 // pred_check
      _
    $region7: #{tpu_custom_call.1} parent=1 // pred_check_branch
      %28 = sbr.rel (0) target = $region9
    $region8: #{tpu_custom_call.1} parent=1 // pred_region
      %30 = vsyncadd [#allocation6], 0
      %s31 = sshll.u32 %s1, 4
      %s32 = int_to_ptr.hbm [resolvable:$true] %s31
      %s33 = sshll.u32 [#allocation5], 4
      %s34 = int_to_ptr.vmem [resolvable:$true] %s33
      %39 = dma.hbm_to_vmem [thread:$0]  %s32, 4096, %s34, [#allocation6], 256, 256, 16
    $region9: #{tpu_custom_call.1} parent=1 // pred_fallthru
      _
    // Predicated region
    $region10: #{tpu_custom_call.1} parent=1 // pred_check
      _
    $region11: #{tpu_custom_call.1} parent=1 // pred_check_branch
      %41 = sbr.rel (0) target = $region13
    $region12: #{tpu_custom_call.1} parent=1 // pred_region
      %43 = vsyncadd [#allocation6], 0
      %s45 = sshll.u32 %s2, 4
      %s46 = int_to_ptr.hbm [resolvable:$true] %s45
      %s47 = sshll.u32 [#allocation7], 4
      %s48 = int_to_ptr.vmem [resolvable:$true] %s47
      %50 = dma.hbm_to_vmem [thread:$0]  %s46, 32, %s48, [#allocation6]
    $region13: #{tpu_custom_call.1} parent=1 // pred_fallthru
      _
    // Predicated region
    $region14: #{tpu_custom_call.1} parent=1 // pred_check
      _
    $region15: #{tpu_custom_call.1} parent=1 // pred_check_branch
      %52 = sbr.rel (0) target = $region17
    $region16: #{tpu_custom_call.1} parent=1 // pred_region
      %54 = vsyncadd [#allocation9], 0
      %s55 = sshll.u32 %s3, 4
      %s56 = int_to_ptr.hbm [resolvable:$true] %s55
      %s57 = sshll.u32 [#allocation8], 4
      %s58 = int_to_ptr.vmem [resolvable:$true] %s57
      %63 = dma.hbm_to_vmem [thread:$0]  %s56, 4096, %s58, [#allocation9], 128, 128, 8
    $region17: #{tpu_custom_call.1} parent=1 // pred_fallthru
      _
    // Predicated region
    $region18: #{tpu_custom_call.1} parent=1 // pred_check
      _
    $region19: #{tpu_custom_call.1} parent=1 // pred_check_branch
      %65 = sbr.rel (0) target = $region21
    $region20: #{tpu_custom_call.1} parent=1 // pred_region
      _
    $region21: #{tpu_custom_call.1} parent=1 // pred_fallthru
      _
    // Predicated region
    $region22: #{tpu_custom_call.1} parent=1 // pred_check
      _
    $region23: #{tpu_custom_call.1} parent=1 // pred_check_branch
      %67 = sbr.rel (0) target = $region25
    $region24: #{tpu_custom_call.1} parent=1 // pred_region
      %69 = dma.done [#allocation3], 512
    $region25: #{tpu_custom_call.1} parent=1 // pred_fallthru
      _
    // Predicated region
    $region26: #{tpu_custom_call.1} parent=1 // pred_check
      _
    $region27: #{tpu_custom_call.1} parent=1 // pred_check_branch
      %71 = sbr.rel (0) target = $region29
    $region28: #{tpu_custom_call.1} parent=1 // pred_region
      %73 = dma.done [#allocation6], 4096
    $region29: #{tpu_custom_call.1} parent=1 // pred_fallthru
      _
    // Predicated region
    $region30: #{tpu_custom_call.1} parent=1 // pred_check
      _
    $region31: #{tpu_custom_call.1} parent=1 // pred_check_branch
      %75 = sbr.rel (0) target = $region33
    $region32: #{tpu_custom_call.1} parent=1 // pred_region
      %77 = dma.done [#allocation6], 32
    $region33: #{tpu_custom_call.1} parent=1 // pred_fallthru
      _
    // Predicated region
    $region34: #{tpu_custom_call.1} parent=1 // pred_check
      _
    $region35: #{tpu_custom_call.1} parent=1 // pred_check_branch
      %79 = sbr.rel (0) target = $region37
    $region36: #{tpu_custom_call.1} parent=1 // pred_region
      %81 = dma.done [#allocation9], 4096
    $region37: #{tpu_custom_call.1} parent=1 // pred_fallthru
      _
    %v82 = vld [vmem:[#allocation2] sm:$0xff]
    %v83 = vld [vmem:[#allocation2 + $0x8] sm:$0xff]
    %v84 = vld [vmem:[#allocation2 + $0x10] sm:$0xff]
    %v85 = vld [vmem:[#allocation2 + $0x18] sm:$0xff]
    %v86 = vld [vmem:[#allocation5] sm:$0xff]
    %v87 = vld [vmem:[#allocation5 + $0x8] sm:$0xff]
    %v88 = vld [vmem:[#allocation5 + $0x10] sm:$0xff]
    %v89 = vld [vmem:[#allocation5 + $0x18] sm:$0xff]
    %v90 = vld [vmem:[#allocation5 + $0x20] sm:$0xff]
    %v91 = vld [vmem:[#allocation5 + $0x28] sm:$0xff]
    %v92 = vld [vmem:[#allocation5 + $0x30] sm:$0xff]
    %v93 = vld [vmem:[#allocation5 + $0x38] sm:$0xff]
    %v94 = vld [vmem:[#allocation5 + $0x40] sm:$0xff]
    %v95 = vld [vmem:[#allocation5 + $0x48] sm:$0xff]
    %v96 = vld [vmem:[#allocation5 + $0x50] sm:$0xff]
    %v97 = vld [vmem:[#allocation5 + $0x58] sm:$0xff]
    %v98 = vld [vmem:[#allocation5 + $0x60] sm:$0xff]
    %v99 = vld [vmem:[#allocation5 + $0x68] sm:$0xff]
    %v100 = vld [vmem:[#allocation5 + $0x70] sm:$0xff]
    %v101 = vld [vmem:[#allocation5 + $0x78] sm:$0xff]
    %v102 = vld [vmem:[#allocation5 + $0x80] sm:$0xff]
    %v103 = vld [vmem:[#allocation5 + $0x88] sm:$0xff]
    %v104 = vld [vmem:[#allocation5 + $0x90] sm:$0xff]
    %v105 = vld [vmem:[#allocation5 + $0x98] sm:$0xff]
    %v106 = vld [vmem:[#allocation5 + $0xa0] sm:$0xff]
    %v107 = vld [vmem:[#allocation5 + $0xa8] sm:$0xff]
    %v108 = vld [vmem:[#allocation5 + $0xb0] sm:$0xff]
    %v109 = vld [vmem:[#allocation5 + $0xb8] sm:$0xff]
    %v110 = vld [vmem:[#allocation5 + $0xc0] sm:$0xff]
    %v111 = vld [vmem:[#allocation5 + $0xc8] sm:$0xff]
    %v112 = vld [vmem:[#allocation5 + $0xd0] sm:$0xff]
    %v113 = vld [vmem:[#allocation5 + $0xd8] sm:$0xff]
    %v114 = vld [vmem:[#allocation5 + $0xe0] sm:$0xff]
    %v115 = vld [vmem:[#allocation5 + $0xe8] sm:$0xff]
    %v116 = vld [vmem:[#allocation5 + $0xf0] sm:$0xff]
    %v117 = vld [vmem:[#allocation5 + $0xf8] sm:$0xff]
    %v118 = vld [vmem:[#allocation7] sm:$0x3]
    %v119 = vld [vmem:[#allocation8] sm:$0xff]
    %v120 = vld [vmem:[#allocation8 + $0x8] sm:$0xff]
    %v121 = vld [vmem:[#allocation8 + $0x10] sm:$0xff]
    %v122 = vld [vmem:[#allocation8 + $0x18] sm:$0xff]
    %v123 = vld [vmem:[#allocation8 + $0x20] sm:$0xff]
    %v124 = vld [vmem:[#allocation8 + $0x28] sm:$0xff]
    %v125 = vld [vmem:[#allocation8 + $0x30] sm:$0xff]
    %v126 = vld [vmem:[#allocation8 + $0x38] sm:$0xff]
    %v127 = vld [vmem:[#allocation8 + $0x40] sm:$0xff]
    %v128 = vld [vmem:[#allocation8 + $0x48] sm:$0xff]
    %v129 = vld [vmem:[#allocation8 + $0x50] sm:$0xff]
    %v130 = vld [vmem:[#allocation8 + $0x58] sm:$0xff]
    %v131 = vld [vmem:[#allocation8 + $0x60] sm:$0xff]
    %v132 = vld [vmem:[#allocation8 + $0x68] sm:$0xff]
    %v133 = vld [vmem:[#allocation8 + $0x70] sm:$0xff]
    %v134 = vld [vmem:[#allocation8 + $0x78] sm:$0xff]
    %v135 = vld [vmem:[#allocation8 + $0x80] sm:$0xff]
    %v136 = vld [vmem:[#allocation8 + $0x88] sm:$0xff]
    %v137 = vld [vmem:[#allocation8 + $0x90] sm:$0xff]
    %v138 = vld [vmem:[#allocation8 + $0x98] sm:$0xff]
    %v139 = vld [vmem:[#allocation8 + $0xa0] sm:$0xff]
    %v140 = vld [vmem:[#allocation8 + $0xa8] sm:$0xff]
    %v141 = vld [vmem:[#allocation8 + $0xb0] sm:$0xff]
    %v142 = vld [vmem:[#allocation8 + $0xb8] sm:$0xff]
    %v143 = vld [vmem:[#allocation8 + $0xc0] sm:$0xff]
    %v144 = vld [vmem:[#allocation8 + $0xc8] sm:$0xff]
    %v145 = vld [vmem:[#allocation8 + $0xd0] sm:$0xff]
    %v146 = vld [vmem:[#allocation8 + $0xd8] sm:$0xff]
    %v147 = vld [vmem:[#allocation8 + $0xe0] sm:$0xff]
    %v148 = vld [vmem:[#allocation8 + $0xe8] sm:$0xff]
    %v149 = vld [vmem:[#allocation8 + $0xf0] sm:$0xff]
    %v150 = vld [vmem:[#allocation8 + $0xf8] sm:$0xff]
    %v151 = vld [vmem:[%s4] sm:$0x1]
    %v153 = vperm.slane %v118, 0
    %v154 = vperm.slane %v118, 1
    %157 = vmatpush.msra.mxu0 %v116
    %158 = vmatpush.msra.mxu0 %v114
    %159 = vmatpush.msra.mxu0 %v112
    %160 = vmatpush.msra.mxu0 %v110
    %161 = vmatpush.msra.mxu0 %v108
    %162 = vmatpush.msra.mxu0 %v106
    %163 = vmatpush.msra.mxu0 %v104
    %164 = vmatpush.msra.mxu0 %v102
    %165 = vmatpush.msra.mxu0 %v100
    %166 = vmatpush.msra.mxu0 %v98
    %167 = vmatpush.msra.mxu0 %v96
    %168 = vmatpush.msra.mxu0 %v94
    %169 = vmatpush.msra.mxu0 %v92
    %170 = vmatpush.msra.mxu0 %v90
    %171 = vmatpush.msra.mxu0 %v88
    %172 = vmatpush.msra.mxu0 %v86
    %173 = vmatmul.f32.gmra.mxu0 %v82
    %v174 = vpop.f32.mrf.mxu0
    %v175 = vadd.f32 %v153, %v174
    %176 = vmatmul.f32.gmra.mxu0 %v83
    %v177 = vpop.f32.mrf.mxu0
    %v178 = vadd.f32 %v153, %v177
    %179 = vmatmul.f32.gmra.mxu0 %v84
    %v180 = vpop.f32.mrf.mxu0
    %v181 = vadd.f32 %v153, %v180
    %182 = vmatmul.f32.gmra.mxu0 %v85
    %v183 = vpop.f32.mrf.mxu0
    %v184 = vadd.f32 %v153, %v183
    %185 = vdwg.mxu0
    %186 = vmatpush.msra.mxu0 %v117
    %187 = vmatpush.msra.mxu0 %v115
    %188 = vmatpush.msra.mxu0 %v113
    %189 = vmatpush.msra.mxu0 %v111
    %190 = vmatpush.msra.mxu0 %v109
    %191 = vmatpush.msra.mxu0 %v107
    %192 = vmatpush.msra.mxu0 %v105
    %193 = vmatpush.msra.mxu0 %v103
    %194 = vmatpush.msra.mxu0 %v101
    %195 = vmatpush.msra.mxu0 %v99
    %196 = vmatpush.msra.mxu0 %v97
    %197 = vmatpush.msra.mxu0 %v95
    %198 = vmatpush.msra.mxu0 %v93
    %199 = vmatpush.msra.mxu0 %v91
    %200 = vmatpush.msra.mxu0 %v89
    %201 = vmatpush.msra.mxu0 %v87
    %202 = vmatmul.f32.gmra.mxu0 %v82
    %v203 = vpop.f32.mrf.mxu0
    %v204 = vadd.f32 %v154, %v203
    %205 = vmatmul.f32.gmra.mxu0 %v83
    %v206 = vpop.f32.mrf.mxu0
    %v207 = vadd.f32 %v154, %v206
    %208 = vmatmul.f32.gmra.mxu0 %v84
    %v209 = vpop.f32.mrf.mxu0
    %v210 = vadd.f32 %v154, %v209
    %211 = vmatmul.f32.gmra.mxu0 %v85
    %v212 = vpop.f32.mrf.mxu0
    %v213 = vadd.f32 %v154, %v212
    %214 = vdwg.mxu0
    %v215 = vmul.f32 %v175, %v175
    %v216 = vmul.f32 %v204, %v204
    %v217 = vmul.f32 %v178, %v178
    %v218 = vmul.f32 %v207, %v207
    %v219 = vmul.f32 %v181, %v181
    %v220 = vmul.f32 %v210, %v210
    %v221 = vmul.f32 %v184, %v184
    %v222 = vmul.f32 %v213, %v213
    %v223 = vmul.f32 %v175, %v215
    %v224 = vmul.f32 %v204, %v216
    %v225 = vmul.f32 %v178, %v217
    %v226 = vmul.f32 %v207, %v218
    %v227 = vmul.f32 %v181, %v219
    %v228 = vmul.f32 %v210, %v220
    %v229 = vmul.f32 %v184, %v221
    %v230 = vmul.f32 %v213, %v222
    %v231 = vmul.f32 %v223, 0.044715
    %v232 = vmul.f32 %v224, 0.044715
    %v233 = vmul.f32 %v225, 0.044715
    %v234 = vmul.f32 %v226, 0.044715
    %v235 = vmul.f32 %v227, 0.044715
    %v236 = vmul.f32 %v228, 0.044715
    %v237 = vmul.f32 %v229, 0.044715
    %v238 = vmul.f32 %v230, 0.044715
    %v239 = vadd.f32 %v175, %v231
    %v240 = vadd.f32 %v204, %v232
    %v241 = vadd.f32 %v178, %v233
    %v242 = vadd.f32 %v207, %v234
    %v243 = vadd.f32 %v181, %v235
    %v244 = vadd.f32 %v210, %v236
    %v245 = vadd.f32 %v184, %v237
    %v246 = vadd.f32 %v213, %v238
    %v247 = vmul.f32 %v239, 0.7978846
    %v248 = vmul.f32 %v240, 0.7978846
    %v249 = vmul.f32 %v241, 0.7978846
    %v250 = vmul.f32 %v242, 0.7978846
    %v251 = vmul.f32 %v243, 0.7978846
    %v252 = vmul.f32 %v244, 0.7978846
    %v253 = vmul.f32 %v245, 0.7978846
    %v254 = vmul.f32 %v246, 0.7978846
    %v255 = vtanh.pop %v247
    %v256 = vtanh.pop %v248
    %v257 = vtanh.pop %v249
    %v258 = vtanh.pop %v250
    %v259 = vtanh.pop %v251
    %v260 = vtanh.pop %v252
    %v261 = vtanh.pop %v253
    %v262 = vtanh.pop %v254
    %v263 = vadd.f32 %v255, 1.0
    %v264 = vadd.f32 %v256, 1.0
    %v265 = vadd.f32 %v257, 1.0
    %v266 = vadd.f32 %v258, 1.0
    %v267 = vadd.f32 %v259, 1.0
    %v268 = vadd.f32 %v260, 1.0
    %v269 = vadd.f32 %v261, 1.0
    %v270 = vadd.f32 %v262, 1.0
    %v271 = vmul.f32 %v263, 0.5
    %v272 = vmul.f32 %v264, 0.5
    %v273 = vmul.f32 %v265, 0.5
    %v274 = vmul.f32 %v266, 0.5
    %v275 = vmul.f32 %v267, 0.5
    %v276 = vmul.f32 %v268, 0.5
    %v277 = vmul.f32 %v269, 0.5
    %v278 = vmul.f32 %v270, 0.5
    %v279 = vmul.f32 %v175, %v271
    %v280 = vmul.f32 %v204, %v272
    %v281 = vmul.f32 %v178, %v273
    %v282 = vmul.f32 %v207, %v274
    %v283 = vmul.f32 %v181, %v275
    %v284 = vmul.f32 %v210, %v276
    %v285 = vmul.f32 %v184, %v277
    %v286 = vmul.f32 %v213, %v278
    %v288 = vperm.slane %v151, 0
    %290 = vmatpush.msra.mxu0 %v134
    %291 = vmatpush.msra.mxu0 %v133
    %292 = vmatpush.msra.mxu0 %v132
    %293 = vmatpush.msra.mxu0 %v131
    %294 = vmatpush.msra.mxu0 %v130
    %295 = vmatpush.msra.mxu0 %v129
    %296 = vmatpush.msra.mxu0 %v128
    %297 = vmatpush.msra.mxu0 %v127
    %298 = vmatpush.msra.mxu0 %v126
    %299 = vmatpush.msra.mxu0 %v125
    %300 = vmatpush.msra.mxu0 %v124
    %301 = vmatpush.msra.mxu0 %v123
    %302 = vmatpush.msra.mxu0 %v122
    %303 = vmatpush.msra.mxu0 %v121
    %304 = vmatpush.msra.mxu0 %v120
    %305 = vmatpush.msra.mxu0 %v119
    %306 = vmatmul.f32.gmra.mxu0 %v279
    %v307 = vpop.f32.mrf.mxu0
    %v308 = vadd.f32 %v288, %v307
    %309 = vmatmul.f32.gmra.mxu0 %v281
    %v310 = vpop.f32.mrf.mxu0
    %v311 = vadd.f32 %v288, %v310
    %312 = vmatmul.f32.gmra.mxu0 %v283
    %v313 = vpop.f32.mrf.mxu0
    %v314 = vadd.f32 %v288, %v313
    %315 = vmatmul.f32.gmra.mxu0 %v285
    %v316 = vpop.f32.mrf.mxu0
    %v317 = vadd.f32 %v288, %v316
    %318 = vdwg.mxu0
    %319 = vmatpush.msra.mxu0 %v150
    %320 = vmatpush.msra.mxu0 %v149
    %321 = vmatpush.msra.mxu0 %v148
    %322 = vmatpush.msra.mxu0 %v147
    %323 = vmatpush.msra.mxu0 %v146
    %324 = vmatpush.msra.mxu0 %v145
    %325 = vmatpush.msra.mxu0 %v144
    %326 = vmatpush.msra.mxu0 %v143
    %327 = vmatpush.msra.mxu0 %v142
    %328 = vmatpush.msra.mxu0 %v141
    %329 = vmatpush.msra.mxu0 %v140
    %330 = vmatpush.msra.mxu0 %v139
    %331 = vmatpush.msra.mxu0 %v138
    %332 = vmatpush.msra.mxu0 %v137
    %333 = vmatpush.msra.mxu0 %v136
    %334 = vmatpush.msra.mxu0 %v135
    %335 = vmatmul.f32.gmra.mxu0 %v280
    %v336 = vpop.f32.mrf.mxu0
    %v337 = vadd.f32 %v308, %v336
    %338 = vmatmul.f32.gmra.mxu0 %v282
    %v339 = vpop.f32.mrf.mxu0
    %v340 = vadd.f32 %v311, %v339
    %341 = vmatmul.f32.gmra.mxu0 %v284
    %v342 = vpop.f32.mrf.mxu0
    %v343 = vadd.f32 %v314, %v342
    %344 = vmatmul.f32.gmra.mxu0 %v286
    %v345 = vpop.f32.mrf.mxu0
    %v346 = vadd.f32 %v317, %v345
    %347 = vdwg.mxu0
    %v348 = vadd.f32 %v337, %v82
    %v349 = vadd.f32 %v340, %v83
    %v350 = vadd.f32 %v343, %v84
    %v351 = vadd.f32 %v346, %v85
    %352 = vst [vmem:[#allocation10] sm:$0xff] %v348
    %353 = vst [vmem:[#allocation10 + $0x8] sm:$0xff] %v349
    %354 = vst [vmem:[#allocation10 + $0x10] sm:$0xff] %v350
    %355 = vst [vmem:[#allocation10 + $0x18] sm:$0xff] %v351
    // Predicated region
    $region38: #{tpu_custom_call.1} parent=1 // pred_check
      _
    $region39: #{tpu_custom_call.1} parent=1 // pred_check_branch
      %357 = sbr.rel (0) target = $region41
    $region40: #{tpu_custom_call.1} parent=1 // pred_region
      %359 = vsyncadd [#allocation4], 0
      %s360 = sshll.u32 [#allocation10], 4
      %s361 = int_to_ptr.vmem [resolvable:$true] %s360
      %s362 = sshll.u32 %s5, 4
      %s363 = int_to_ptr.hbm [resolvable:$true] %s362
      %368 = dma.vmem_to_hbm [thread:$0]  %s361, 512, %s363, [#allocation4], 128, 128, 8
    $region41: #{tpu_custom_call.1} parent=1 // pred_fallthru
      _
    // Predicated region
    $region42: #{tpu_custom_call.1} parent=1 // pred_check
      _
    $region43: #{tpu_custom_call.1} parent=1 // pred_check_branch
      %370 = sbr.rel (0) target = $region45
    $region44: #{tpu_custom_call.1} parent=1 // pred_region
      %372 = dma.done [#allocation4], 512
    $region45: #{tpu_custom_call.1} parent=1 // pred_fallthru
      _
    %373 = vsyncpa [#allocation3], 1
    %374 = vsyncpa [#allocation6], 1
    %375 = vsyncpa [#allocation9], 1
    %376 = vsyncpa [#allocation4], 1

</llo_original>
